<compile_context>
chip_gen: v5e
topology: v5e:2x2
jax: 0.10.0
libtpu: 0.0.40
codegen_flags: <defaults>
</compile_context>

<pallas_src>
import functools

import jax
import jax.numpy as jnp
from jax.experimental import pallas as pl
from jax.experimental.pallas import tpu as pltpu

# ----------------------------- sizes / config --------------------------------
B = 2            # batch of point clouds
V = 4            # cfg.MODEL.PROJECT.NUM_VIEWS
C = 32           # cfg.MODEL.BACKBONE.CHANNEL
H = W = 16      # projected image resolution
N_PTS = 64       # points per cloud
N_CLS = 4        # number of class names
N_PAD = 128      # lane-dense padded class count for the kernel output

ADAPTER_RATIO = 0.6        # cfg.MODEL.ADAPTER.RATIO
FUSION_INIT = 0.5          # cfg.MODEL.ADAPTER.INIT
LOGIT_SCALE_INIT = 2.6592  # ln(1/0.07), CLIP default
BN_EPS = 1e-5

VMEM = pl.BlockSpec(memory_space=pltpu.MemorySpace.VMEM)


# ------------------------------ fused Pallas kernel ---------------------------
def _fused_kernel(adapter_ratio, num_views, chan, kpix,
                  x_ref,            # (B, V*K) single-channel per-view pixels
                  wvis_ref,         # (K, C)   channel-folded visual weight
                  wg_ref,           # (V*C, C) global_f Linear, BN2 folded in
                  wv1_ref,          # (C, C)
                  wv2_ref,          # (C, V*C)
                  txt_ref,          # (V*C, N_PAD) pre-normalized * exp(scale), transposed, zero-padded
                  vecs_ref,         # (8, V*C) packed 1-row operands
                  o_ref):           # (B, N_PAD) logits (lane-dense, sliced in wrapper)
    # --- 1) visual encoder: per-view matmuls, results stay in vregs and are
    #        lane-concatenated into the (B, V*C) feature (no scratch stores). ---
    w = wvis_ref[...]
    parts = [
        jnp.dot(x_ref[:, v * kpix:(v + 1) * kpix], w,
                preferred_element_type=jnp.float32)
        for v in range(num_views)                         # static, V small
    ]
    feat = jnp.concatenate(parts, axis=-1) + vecs_ref[0:1, :]   # res_feat (B, V*C)

    # --- 2) inter-view Adapter (fusion*BN1(eval) as affine, BN2 folded into wg,
    #        Dropout = identity) ---
    x = feat * vecs_ref[1:2, :] + vecs_ref[2:3, :]
    g = jnp.maximum(
        jnp.dot(x, wg_ref[...], preferred_element_type=jnp.float32)
        + vecs_ref[3:4, :chan], 0.0)
    v1 = jnp.maximum(
        jnp.dot(g, wv1_ref[...], preferred_element_type=jnp.float32)
        + vecs_ref[4:5, :chan], 0.0)
    vf = jnp.maximum(
        jnp.dot(v1, wv2_ref[...], preferred_element_type=jnp.float32)
        + vecs_ref[5:6, :], 0.0)
    img_feat = vf * adapter_ratio + feat * (1.0 - adapter_ratio)

    # --- 3) L2 normalize (rsqrt -> EUP, eps guard) + logits; logit scale is
    #        pre-folded into txt_ref, output is lane-dense (B, 128). ---
    sq = jnp.sum(img_feat * img_feat, axis=-1, keepdims=True)
    img_n = img_feat * jax.lax.rsqrt(jnp.maximum(sq, 1e-12))
    o_ref[...] = jnp.dot(img_n, txt_ref[...], preferred_element_type=jnp.float32)


def pointclip_fused(x, w_fold, wg_fold, wv1, wv2, txt_t, vecs):
    kern = functools.partial(_fused_kernel, ADAPTER_RATIO, V, C, H * W)
    args = (x, w_fold, wg_fold, wv1, wv2, txt_t, vecs)
    flops = (2 * B * V * (H * W) * C                      # visual matmuls
             + 2 * B * (V * C * C + C * C + C * V * C)    # adapter matmuls
             + 2 * B * (V * C) * N_PAD)                   # logits matmul
    bytes_accessed = sum(int(a.size) * a.dtype.itemsize for a in args) + B * N_PAD * 4
    return pl.pallas_call(
        kern,
        out_shape=jax.ShapeDtypeStruct((B, N_PAD), jnp.float32),
        in_specs=[VMEM] * 7,
        out_specs=VMEM,
        cost_estimate=pl.CostEstimate(flops=flops, transcendentals=B,
                                      bytes_accessed=bytes_accessed),
    )(*args)


# --------------------------------- glue ----------------------------------------
def get_img(pc, num_views, img_size):
    """Multi-view depth projection (mv_proj front half), fully vectorized.

    Returns (B, V, H*W) single-channel depth images; the 3x identical-channel
    repeat of mv_proj is folded into the visual weight instead (see wrapper).
    """
    # TODO(synk): PCViews.get_img is an external module; this is a simplified
    # deterministic orthographic max-depth projection with matching output
    # shape (normalization is per-sample/per-view like the reference).
    ang = jnp.arange(num_views, dtype=jnp.float32) * (2.0 * jnp.pi / num_views)
    c, s = jnp.cos(ang), jnp.sin(ang)
    z = jnp.zeros_like(c)
    o = jnp.ones_like(c)
    R = jnp.stack([jnp.stack([c, z, s], -1),
                   jnp.stack([z, o, z], -1),
                   jnp.stack([-s, z, c], -1)], axis=-2)       # (V,3,3)
    pr = jnp.einsum("bnc,vcd->bvnd", pc, R)                   # (B,V,N,3)
    xy = pr[..., :2]
    depth = pr[..., 2] + 2.0
    lo = xy.min(axis=2, keepdims=True)                        # per-sample/per-view
    hi = xy.max(axis=2, keepdims=True)
    xy = (xy - lo) / (hi - lo + 1e-6)
    idx = jnp.clip((xy * (img_size - 1)).astype(jnp.int32), 0, img_size - 1)
    flat = idx[..., 0] * img_size + idx[..., 1]               # (B,V,N)

    # Vectorized max-scatter: one-hot mask + max-reduce over points (matches a
    # zeros-initialized scatter-max).
    # TODO(synk): if this XLA-side projection dominates wall clock, move it
    # into a Pallas kernel fed directly by pc instead of round-tripping images.
    hw = jnp.arange(img_size * img_size, dtype=jnp.int32)
    hit = flat[..., None] == hw                               # (B,V,N,H*W)
    masked = jnp.where(hit, depth[..., None], -jnp.inf)
    img = jnp.maximum(jnp.max(masked, axis=2), 0.0)           # (B,V,H*W)
    return img


def init_params(key):
    ks = jax.random.split(key, 6)
    din = 3 * H * W
    p = {}
    # TODO(synk): clip_model.visual is an external CLIP ViT/ResNet; synthesized
    # here as a single linear projection (flatten NCHW + matmul) with matching I/O.
    p["w_vis"] = jax.random.normal(ks[0], (din, C), jnp.float32) * 0.02
    p["b_vis"] = jnp.zeros((C,), jnp.float32)
    # Adapter parameters
    p["fusion"] = jnp.full((V,), FUSION_INIT, jnp.float32)
    p["bn1_gamma"] = jnp.ones((C,), jnp.float32)
    p["bn1_beta"] = jnp.zeros((C,), jnp.float32)
    p["bn1_mean"] = jnp.zeros((C,), jnp.float32)
    p["bn1_var"] = jnp.ones((C,), jnp.float32)
    p["wg"] = jax.random.normal(ks[1], (V * C, C), jnp.float32) * 0.02
    p["bg"] = jnp.zeros((C,), jnp.float32)
    p["bn2_gamma"] = jnp.ones((C,), jnp.float32)
    p["bn2_beta"] = jnp.zeros((C,), jnp.float32)
    p["bn2_mean"] = jnp.zeros((C,), jnp.float32)
    p["bn2_var"] = jnp.ones((C,), jnp.float32)
    p["wv1"] = jax.random.normal(ks[2], (C, C), jnp.float32) * 0.02
    p["bv1"] = jnp.zeros((C,), jnp.float32)
    p["wv2"] = jax.random.normal(ks[3], (C, V * C), jnp.float32) * 0.02
    p["bv2"] = jnp.zeros((V * C,), jnp.float32)
    # TODO(synk): Textual_Encoder uses the external CLIP text transformer;
    # per-class text features are synthesized deterministically with the same
    # shape, then tiled over views exactly like `.repeat(1, num_views)`.
    p["text_feat"] = jax.random.normal(ks[4], (N_CLS, C), jnp.float32) * 0.1
    p["logit_scale"] = jnp.asarray(LOGIT_SCALE_INIT, jnp.float32)
    return p


def pointclip_forward(pc, p):
    HW = H * W
    vc = V * C

    # mv_proj (single-channel) -> lane-dense (B, V*H*W) activations, no transpose
    img = get_img(pc, V, H)                                  # (B, V, H*W)
    x = img.reshape(B, V * HW)

    # fold the 3x identical-channel repeat into the visual weight: K 768 -> 256
    w_fold = p["w_vis"][:HW] + p["w_vis"][HW:2 * HW] + p["w_vis"][2 * HW:]

    # fold fusion_ratio * BatchNormPoint(eval) into a per-(view,channel) affine
    s1 = p["bn1_gamma"] * jax.lax.rsqrt(p["bn1_var"] + BN_EPS)
    b1 = p["bn1_beta"] - p["bn1_mean"] * s1
    pre_s = (p["fusion"][:, None] * s1[None, :]).reshape(vc)
    pre_b = jnp.tile(b1, V)

    # fold BN2 (eval) into the global_f Linear weight/bias
    s2 = p["bn2_gamma"] * jax.lax.rsqrt(p["bn2_var"] + BN_EPS)
    t2 = p["bn2_beta"] - p["bn2_mean"] * s2
    wg_fold = p["wg"] * s2[None, :]
    bg_fold = p["bg"] * s2 + t2

    # pack all 1-row operands into a single (8, V*C) VMEM operand (one DMA)
    vecs = jnp.zeros((8, vc), jnp.float32)
    vecs = vecs.at[0].set(jnp.tile(p["b_vis"], V))           # visual bias, tiled over views
    vecs = vecs.at[1].set(pre_s)
    vecs = vecs.at[2].set(pre_b)
    vecs = vecs.at[3, :C].set(bg_fold)
    vecs = vecs.at[4, :C].set(p["bv1"])
    vecs = vecs.at[5].set(p["bv2"])

    # text features repeated over views (torch .repeat(1, num_views)), L2-
    # normalized, scaled by exp(logit_scale), transposed to MXU (K,N) layout
    # and zero-padded to 128 classes so the kernel output is lane-dense.
    txt = jnp.tile(p["text_feat"], (1, V))                   # (N_CLS, V*C)
    txt = txt * jax.lax.rsqrt(
        jnp.maximum(jnp.sum(txt * txt, axis=-1, keepdims=True), 1e-12))
    txt = txt * jnp.exp(p["logit_scale"])
    txt_t = jnp.zeros((vc, N_PAD), jnp.float32).at[:, :N_CLS].set(txt.T)

    # fused visual encoder + adapter + normalize + logits (single Pallas call)
    logits_pad = pointclip_fused(x, w_fold, wg_fold, p["wv1"], p["wv2"], txt_t, vecs)
    return logits_pad[:, :N_CLS]                             # (B, N_CLS)


# ----------------------------------- main ---------------------------------------
if __name__ == "__main__":
    key = jax.random.PRNGKey(0)
    k_pc, k_params = jax.random.split(key)
    pc = jax.random.normal(k_pc, (B, N_PTS, 3), jnp.float32)
    params = init_params(k_params)

    logits = jax.jit(pointclip_forward)(pc, params)
    jax.block_until_ready(logits)

    assert logits.shape == (B, N_CLS), logits.shape
    assert bool(jnp.all(jnp.isfinite(logits)))
    print("KERNEL_OK")
</pallas_src>

<mosaic_0001>
module attributes {stable_mosaic.version = 11 : i64} {
  func.func @_fused_kernel(%arg0: memref<2x1024xf32, #tpu.memory_space<vmem>>, %arg1: memref<256x32xf32, #tpu.memory_space<vmem>>, %arg2: memref<128x32xf32, #tpu.memory_space<vmem>>, %arg3: memref<32x32xf32, #tpu.memory_space<vmem>>, %arg4: memref<32x128xf32, #tpu.memory_space<vmem>>, %arg5: memref<128x128xf32, #tpu.memory_space<vmem>>, %arg6: memref<8x128xf32, #tpu.memory_space<vmem>>, %arg7: memref<2x128xf32, #tpu.memory_space<vmem>>) attributes {dimension_semantics = [], scalar_prefetch = 0 : i64, scratch_operands = 0 : i64, tpu.core_type = #tpu.core_type<tc>} {
    %c0 = arith.constant 0 : index
    %c0_0 = arith.constant 0 : index
    %0 = vector.load %arg1[%c0, %c0_0] : memref<256x32xf32, #tpu.memory_space<vmem>>, vector<256x32xf32>
    %c0_1 = arith.constant 0 : index
    %c0_2 = arith.constant 0 : index
    %1 = vector.load %arg0[%c0_1, %c0_2] : memref<2x1024xf32, #tpu.memory_space<vmem>>, vector<2x256xf32>
    %cst = arith.constant dense<0.000000e+00> : vector<2x32xf32>
    %2 = tpu.matmul %1, %0, %cst {dimension_numbers = #tpu.dot_dimension_numbers<[1], [0], [0], [1], [0, 0, 1, 1], [], []>} : vector<2x256xf32>, vector<256x32xf32>, vector<2x32xf32> -> vector<2x32xf32>
    %c0_3 = arith.constant 0 : index
    %c256 = arith.constant 256 : index
    %3 = vector.load %arg0[%c0_3, %c256] : memref<2x1024xf32, #tpu.memory_space<vmem>>, vector<2x256xf32>
    %cst_4 = arith.constant dense<0.000000e+00> : vector<2x32xf32>
    %4 = tpu.matmul %3, %0, %cst_4 {dimension_numbers = #tpu.dot_dimension_numbers<[1], [0], [0], [1], [0, 0, 1, 1], [], []>} : vector<2x256xf32>, vector<256x32xf32>, vector<2x32xf32> -> vector<2x32xf32>
    %c0_5 = arith.constant 0 : index
    %c512 = arith.constant 512 : index
    %5 = vector.load %arg0[%c0_5, %c512] : memref<2x1024xf32, #tpu.memory_space<vmem>>, vector<2x256xf32>
    %cst_6 = arith.constant dense<0.000000e+00> : vector<2x32xf32>
    %6 = tpu.matmul %5, %0, %cst_6 {dimension_numbers = #tpu.dot_dimension_numbers<[1], [0], [0], [1], [0, 0, 1, 1], [], []>} : vector<2x256xf32>, vector<256x32xf32>, vector<2x32xf32> -> vector<2x32xf32>
    %c0_7 = arith.constant 0 : index
    %c768 = arith.constant 768 : index
    %7 = vector.load %arg0[%c0_7, %c768] : memref<2x1024xf32, #tpu.memory_space<vmem>>, vector<2x256xf32>
    %cst_8 = arith.constant dense<0.000000e+00> : vector<2x32xf32>
    %8 = tpu.matmul %7, %0, %cst_8 {dimension_numbers = #tpu.dot_dimension_numbers<[1], [0], [0], [1], [0, 0, 1, 1], [], []>} : vector<2x256xf32>, vector<256x32xf32>, vector<2x32xf32> -> vector<2x32xf32>
    %9 = tpu.concatenate %2, %4, %6, %8 in 1 : vector<2x32xf32>, vector<2x32xf32>, vector<2x32xf32>, vector<2x32xf32> -> vector<2x128xf32>
    %c0_9 = arith.constant 0 : index
    %c0_10 = arith.constant 0 : index
    %10 = vector.load %arg6[%c0_9, %c0_10] : memref<8x128xf32, #tpu.memory_space<vmem>>, vector<1x128xf32>
    %11 = vector.broadcast %10 : vector<1x128xf32> to vector<2x128xf32>
    %12 = arith.addf %9, %11 : vector<2x128xf32>
    %c1 = arith.constant 1 : index
    %c0_11 = arith.constant 0 : index
    %13 = vector.load %arg6[%c1, %c0_11] : memref<8x128xf32, #tpu.memory_space<vmem>>, vector<1x128xf32>
    %14 = vector.broadcast %13 : vector<1x128xf32> to vector<2x128xf32>
    %15 = arith.mulf %12, %14 : vector<2x128xf32>
    %c2 = arith.constant 2 : index
    %c0_12 = arith.constant 0 : index
    %16 = vector.load %arg6[%c2, %c0_12] : memref<8x128xf32, #tpu.memory_space<vmem>>, vector<1x128xf32>
    %17 = vector.broadcast %16 : vector<1x128xf32> to vector<2x128xf32>
    %18 = arith.addf %15, %17 : vector<2x128xf32>
    %c0_13 = arith.constant 0 : index
    %c0_14 = arith.constant 0 : index
    %19 = vector.load %arg2[%c0_13, %c0_14] : memref<128x32xf32, #tpu.memory_space<vmem>>, vector<128x32xf32>
    %cst_15 = arith.constant dense<0.000000e+00> : vector<2x32xf32>
    %20 = tpu.matmul %18, %19, %cst_15 {dimension_numbers = #tpu.dot_dimension_numbers<[1], [0], [0], [1], [0, 0, 1, 1], [], []>} : vector<2x128xf32>, vector<128x32xf32>, vector<2x32xf32> -> vector<2x32xf32>
    %c3 = arith.constant 3 : index
    %c0_16 = arith.constant 0 : index
    %21 = vector.load %arg6[%c3, %c0_16] : memref<8x128xf32, #tpu.memory_space<vmem>>, vector<1x32xf32>
    %22 = vector.broadcast %21 : vector<1x32xf32> to vector<2x32xf32>
    %23 = arith.addf %20, %22 : vector<2x32xf32>
    %cst_17 = arith.constant 0.000000e+00 : f32
    %24 = vector.broadcast %cst_17 : f32 to vector<2x32xf32>
    %25 = arith.maximumf %23, %24 : vector<2x32xf32>
    %c0_18 = arith.constant 0 : index
    %c0_19 = arith.constant 0 : index
    %26 = vector.load %arg3[%c0_18, %c0_19] : memref<32x32xf32, #tpu.memory_space<vmem>>, vector<32x32xf32>
    %cst_20 = arith.constant dense<0.000000e+00> : vector<2x32xf32>
    %27 = tpu.matmul %25, %26, %cst_20 {dimension_numbers = #tpu.dot_dimension_numbers<[1], [0], [0], [1], [0, 0, 1, 1], [], []>} : vector<2x32xf32>, vector<32x32xf32>, vector<2x32xf32> -> vector<2x32xf32>
    %c4 = arith.constant 4 : index
    %c0_21 = arith.constant 0 : index
    %28 = vector.load %arg6[%c4, %c0_21] : memref<8x128xf32, #tpu.memory_space<vmem>>, vector<1x32xf32>
    %29 = vector.broadcast %28 : vector<1x32xf32> to vector<2x32xf32>
    %30 = arith.addf %27, %29 : vector<2x32xf32>
    %cst_22 = arith.constant 0.000000e+00 : f32
    %31 = vector.broadcast %cst_22 : f32 to vector<2x32xf32>
    %32 = arith.maximumf %30, %31 : vector<2x32xf32>
    %c0_23 = arith.constant 0 : index
    %c0_24 = arith.constant 0 : index
    %33 = vector.load %arg4[%c0_23, %c0_24] : memref<32x128xf32, #tpu.memory_space<vmem>>, vector<32x128xf32>
    %cst_25 = arith.constant dense<0.000000e+00> : vector<2x128xf32>
    %34 = tpu.matmul %32, %33, %cst_25 {dimension_numbers = #tpu.dot_dimension_numbers<[1], [0], [0], [1], [0, 0, 1, 1], [], []>} : vector<2x32xf32>, vector<32x128xf32>, vector<2x128xf32> -> vector<2x128xf32>
    %c5 = arith.constant 5 : index
    %c0_26 = arith.constant 0 : index
    %35 = vector.load %arg6[%c5, %c0_26] : memref<8x128xf32, #tpu.memory_space<vmem>>, vector<1x128xf32>
    %36 = vector.broadcast %35 : vector<1x128xf32> to vector<2x128xf32>
    %37 = arith.addf %34, %36 : vector<2x128xf32>
    %cst_27 = arith.constant 0.000000e+00 : f32
    %38 = vector.broadcast %cst_27 : f32 to vector<2x128xf32>
    %39 = arith.maximumf %37, %38 : vector<2x128xf32>
    %cst_28 = arith.constant 6.000000e-01 : f32
    %40 = vector.broadcast %cst_28 : f32 to vector<2x128xf32>
    %41 = arith.mulf %39, %40 : vector<2x128xf32>
    %cst_29 = arith.constant 4.000000e-01 : f32
    %42 = vector.broadcast %cst_29 : f32 to vector<2x128xf32>
    %43 = arith.mulf %12, %42 : vector<2x128xf32>
    %44 = arith.addf %41, %43 : vector<2x128xf32>
    %45 = arith.mulf %44, %44 : vector<2x128xf32>
    %cst_30 = arith.constant dense<0.000000e+00> : vector<2xf32>
    %46 = vector.multi_reduction <add>, %45, %cst_30 [1] : vector<2x128xf32> to vector<2xf32>
    %47 = vector.shape_cast %46 : vector<2xf32> to vector<2x1xf32>
    %cst_31 = arith.constant 9.99999996E-13 : f32
    %48 = vector.broadcast %cst_31 : f32 to vector<2x1xf32>
    %49 = arith.maximumf %47, %48 : vector<2x1xf32>
    %50 = math.rsqrt %49 : vector<2x1xf32>
    %51 = vector.broadcast %50 : vector<2x1xf32> to vector<2x128xf32>
    %52 = arith.mulf %44, %51 : vector<2x128xf32>
    %c0_32 = arith.constant 0 : index
    %c0_33 = arith.constant 0 : index
    %53 = vector.load %arg5[%c0_32, %c0_33] : memref<128x128xf32, #tpu.memory_space<vmem>>, vector<128x128xf32>
    %cst_34 = arith.constant dense<0.000000e+00> : vector<2x128xf32>
    %54 = tpu.matmul %52, %53, %cst_34 {dimension_numbers = #tpu.dot_dimension_numbers<[1], [0], [0], [1], [0, 0, 1, 1], [], []>} : vector<2x128xf32>, vector<128x128xf32>, vector<2x128xf32> -> vector<2x128xf32>
    %c0_35 = arith.constant 0 : index
    %c0_36 = arith.constant 0 : index
    %55 = vector.load %arg7[%c0_35, %c0_36] : memref<2x128xf32, #tpu.memory_space<vmem>>, vector<2x128xf32>
    tpu.vector_store %arg7[%c0_35, %c0_36], %54 {strides = array<i32>} : memref<2x128xf32, #tpu.memory_space<vmem>>, vector<2x128xf32>,
    return
  }
}

</mosaic_0001>

<llo_original>
// kernel: mul.6
$region0: #{mul.6}
  #allocation0 [shape = 's32[1]{0}', space=sflag, size = 0x4, scoped, tag = 'scoped memory for mul.6']
  %s0 = inlined_call_operand.vmem [shape: f32[4,32], index: 0, kind: input, shape index: {}, may-alias: {0,1}]
  %s1 = inlined_call_operand.vmem [shape: f32[4,32], index: 1, kind: input, shape index: {}, may-alias: {0,1}]
  %s2 = inlined_call_operand.vmem [shape: f32[4,32], index: 2, kind: output, shape index: {}]
  %v3 = vld [vmem:[%s0] sm:$0xf]
  %v4 = vld [vmem:[%s1] sm:$0xf]
  %5 = xla_tuple %v3, %v4
  %6 = xla_tuple %5
  %v7 = vmul.f32 %v3, %v4
  %8 = xla_tuple %v7
  %9 = vst [vmem:[%s2] sm:$0xf] %v7

// kernel: tile.23
$region0: #{tile.23}
  #allocation0 [shape = 's32[1]{0}', space=sflag, size = 0x4, scoped, tag = 'scoped memory for tile.23']
  %s0 = inlined_call_operand.vmem [shape: f32[32], index: 0, kind: input, shape index: {}]
  %s1 = inlined_call_operand.vmem [shape: f32[4,32], index: 1, kind: output, shape index: {}]
  // Predicated region
  $region2: #{tile.23} parent=0 // pred_check
    _
  $region3: #{tile.23} parent=0 // pred_check_branch
    %3 = sbr.rel (0) target = $region5
  $region4: #{tile.23} parent=0 // pred_region
    _
  $region5: #{tile.23} parent=0 // pred_fallthru
    _
  %v4 = vld [vmem:[%s0] ss:$0 sm:$0xff]
  %5 = vst [vmem:[%s1] sm:$0xf] %v4

// kernel: pointclip_forward.1
$region0: #{pointclip_forward.1}
  #allocation0 [shape = 'u32[]', space=smem, size = 0x4, offset = 0x4, fixed_abs, tag = 'smem constant byte address 0x4 - core index']
  #allocation1 [shape = 'u32[72,128]{1,0:T(1,128)}', space=vmem, size = 0x9000, scoped, tag = 'internal scratch']
  %s0 = inlined_call_operand.vmem [shape: f32[2,1024], index: 0, kind: input, shape index: {}]
  %s1 = inlined_call_operand.vmem [shape: f32[256,32], index: 1, kind: input, shape index: {}]
  %s2 = inlined_call_operand.vmem [shape: f32[128,32], index: 2, kind: input, shape index: {}]
  %s3 = inlined_call_operand.vmem [shape: f32[32,32], index: 3, kind: input, shape index: {}]
  %s4 = inlined_call_operand.vmem [shape: f32[32,128], index: 4, kind: input, shape index: {}]
  %s5 = inlined_call_operand.vmem [shape: f32[128,128], index: 5, kind: input, shape index: {}]
  %s6 = inlined_call_operand.vmem [shape: f32[8,128], index: 6, kind: input, shape index: {}]
  %s7 = inlined_call_operand.hbm [shape: f32[2,128], index: 7, kind: output, shape index: {}]
  %s8 = sld [smem:[#allocation0]]
  $region38: #{pointclip_forward.1} parent=0
    _
  %s10 = ssub.s32 1, %s8
  %s11 = scalar_select 0, %s10, %s8
  $region1: #{pointclip_forward.1} parent=0
    #allocation2 [shape = 'u8[1024]{0}', space=vmem, size = 0x400, scoped, tag = 'output window, operand 0, single buffered']
    #allocation3 [shape = 's32[1]{0}', space=sflag, size = 0x4, scoped, tag = 'scoped memory for pointclip_forward.1']
    %12 = vsyncpa [#allocation3], 0
    // Predicated region
    $region2: #{pointclip_forward.1} parent=1 // pred_check
      _
    $region3: #{pointclip_forward.1} parent=1 // pred_check_branch
      %14 = sbr.rel (0) target = $region5
    $region4: #{pointclip_forward.1} parent=1 // pred_region
      _
    $region5: #{pointclip_forward.1} parent=1 // pred_fallthru
      _
    // Predicated region
    $region6: #{pointclip_forward.1} parent=1 // pred_check
      _
    $region7: #{pointclip_forward.1} parent=1 // pred_check_branch
      %16 = sbr.rel (0) target = $region9
    $region8: #{pointclip_forward.1} parent=1 // pred_region
      _
    $region9: #{pointclip_forward.1} parent=1 // pred_fallthru
      _
    // Predicated region
    $region10: #{pointclip_forward.1} parent=1 // pred_check
      _
    $region11: #{pointclip_forward.1} parent=1 // pred_check_branch
      %18 = sbr.rel (0) target = $region13
    $region12: #{pointclip_forward.1} parent=1 // pred_region
      _
    $region13: #{pointclip_forward.1} parent=1 // pred_fallthru
      _
    // Predicated region
    $region14: #{pointclip_forward.1} parent=1 // pred_check
      _
    $region15: #{pointclip_forward.1} parent=1 // pred_check_branch
      %20 = sbr.rel (0) target = $region17
    $region16: #{pointclip_forward.1} parent=1 // pred_region
      _
    $region17: #{pointclip_forward.1} parent=1 // pred_fallthru
      _
    // Predicated region
    $region18: #{pointclip_forward.1} parent=1 // pred_check
      _
    $region19: #{pointclip_forward.1} parent=1 // pred_check_branch
      %22 = sbr.rel (0) target = $region21
    $region20: #{pointclip_forward.1} parent=1 // pred_region
      _
    $region21: #{pointclip_forward.1} parent=1 // pred_fallthru
      _
    // Predicated region
    $region22: #{pointclip_forward.1} parent=1 // pred_check
      _
    $region23: #{pointclip_forward.1} parent=1 // pred_check_branch
      %24 = sbr.rel (0) target = $region25
    $region24: #{pointclip_forward.1} parent=1 // pred_region
      _
    $region25: #{pointclip_forward.1} parent=1 // pred_fallthru
      _
    // Predicated region
    $region26: #{pointclip_forward.1} parent=1 // pred_check
      _
    $region27: #{pointclip_forward.1} parent=1 // pred_check_branch
      %26 = sbr.rel (0) target = $region29
    $region28: #{pointclip_forward.1} parent=1 // pred_region
      _
    $region29: #{pointclip_forward.1} parent=1 // pred_fallthru
      _
    %v27 = vld [vmem:[%s1] sm:$0xff]
    %v28 = vld [vmem:[%s1 + $0x8] sm:$0xff]
    %v29 = vld [vmem:[%s1 + $0x10] sm:$0xff]
    %v30 = vld [vmem:[%s1 + $0x18] sm:$0xff]
    %v31 = vld [vmem:[%s1 + $0x20] sm:$0xff]
    %v32 = vld [vmem:[%s1 + $0x28] sm:$0xff]
    %v33 = vld [vmem:[%s1 + $0x30] sm:$0xff]
    %v34 = vld [vmem:[%s1 + $0x38] sm:$0xff]
    %v35 = vld [vmem:[%s1 + $0x40] sm:$0xff]
    %v36 = vld [vmem:[%s1 + $0x48] sm:$0xff]
    %v37 = vld [vmem:[%s1 + $0x50] sm:$0xff]
    %v38 = vld [vmem:[%s1 + $0x58] sm:$0xff]
    %v39 = vld [vmem:[%s1 + $0x60] sm:$0xff]
    %v40 = vld [vmem:[%s1 + $0x68] sm:$0xff]
    %v41 = vld [vmem:[%s1 + $0x70] sm:$0xff]
    %v42 = vld [vmem:[%s1 + $0x78] sm:$0xff]
    %v43 = vld [vmem:[%s1 + $0x80] sm:$0xff]
    %v44 = vld [vmem:[%s1 + $0x88] sm:$0xff]
    %v45 = vld [vmem:[%s1 + $0x90] sm:$0xff]
    %v46 = vld [vmem:[%s1 + $0x98] sm:$0xff]
    %v47 = vld [vmem:[%s1 + $0xa0] sm:$0xff]
    %v48 = vld [vmem:[%s1 + $0xa8] sm:$0xff]
    %v49 = vld [vmem:[%s1 + $0xb0] sm:$0xff]
    %v50 = vld [vmem:[%s1 + $0xb8] sm:$0xff]
    %v51 = vld [vmem:[%s1 + $0xc0] sm:$0xff]
    %v52 = vld [vmem:[%s1 + $0xc8] sm:$0xff]
    %v53 = vld [vmem:[%s1 + $0xd0] sm:$0xff]
    %v54 = vld [vmem:[%s1 + $0xd8] sm:$0xff]
    %v55 = vld [vmem:[%s1 + $0xe0] sm:$0xff]
    %v56 = vld [vmem:[%s1 + $0xe8] sm:$0xff]
    %v57 = vld [vmem:[%s1 + $0xf0] sm:$0xff]
    %v58 = vld [vmem:[%s1 + $0xf8] sm:$0xff]
    %v59 = vld [vmem:[%s0] sm:$0xf]
    %61 = vst [vmem:[#allocation1] ss:$4 sm:$0xff] %v59
    %v62 = vld.sshfl [vmem:[#allocation1] sm:$0xff pattern:$0x73625140]
    %v63 = vld.sshfl [vmem:[#allocation1 + $0x8] sm:$0xff pattern:$0x73625140]
    %66 = vmatpush.msra.mxu0 %v42
    %67 = vmatpush.msra.mxu0 %v41
    %68 = vmatpush.msra.mxu0 %v40
    %69 = vmatpush.msra.mxu0 %v39
    %70 = vmatpush.msra.mxu0 %v38
    %71 = vmatpush.msra.mxu0 %v37
    %72 = vmatpush.msra.mxu0 %v36
    %73 = vmatpush.msra.mxu0 %v35
    %74 = vmatpush.msra.mxu0 %v34
    %75 = vmatpush.msra.mxu0 %v33
    %76 = vmatpush.msra.mxu0 %v32
    %77 = vmatpush.msra.mxu0 %v31
    %78 = vmatpush.msra.mxu0 %v30
    %79 = vmatpush.msra.mxu0 %v29
    %80 = vmatpush.msra.mxu0 %v28
    %81 = vmatpush.msra.mxu0 %v27
    %82 = vmatmul.f32.gmra.mxu0 %v62
    %v83 = vpop.f32.mrf.mxu0
    %v84 = vadd.f32 0.0, %v83
    %85 = vdwg.mxu0
    %86 = vmatpush.msra.mxu0 %v58
    %87 = vmatpush.msra.mxu0 %v57
    %88 = vmatpush.msra.mxu0 %v56
    %89 = vmatpush.msra.mxu0 %v55
    %90 = vmatpush.msra.mxu0 %v54
    %91 = vmatpush.msra.mxu0 %v53
    %92 = vmatpush.msra.mxu0 %v52
    %93 = vmatpush.msra.mxu0 %v51
    %94 = vmatpush.msra.mxu0 %v50
    %95 = vmatpush.msra.mxu0 %v49
    %96 = vmatpush.msra.mxu0 %v48
    %97 = vmatpush.msra.mxu0 %v47
    %98 = vmatpush.msra.mxu0 %v46
    %99 = vmatpush.msra.mxu0 %v45
    %100 = vmatpush.msra.mxu0 %v44
    %101 = vmatpush.msra.mxu0 %v43
    %102 = vmatmul.f32.gmra.mxu0 %v63
    %v103 = vpop.f32.mrf.mxu0
    %v104 = vadd.f32 %v84, %v103
    %105 = vdwg.mxu0
    %v106 = vld [vmem:[%s0 + $0x4] sm:$0xf]
    %108 = vst [vmem:[#allocation1] ss:$4 sm:$0xff] %v106
    %v109 = vld.sshfl [vmem:[#allocation1] sm:$0xff pattern:$0x73625140]
    %v110 = vld.sshfl [vmem:[#allocation1 + $0x8] sm:$0xff pattern:$0x73625140]
    %113 = vmatpush.msra.mxu0 %v42
    %114 = vmatpush.msra.mxu0 %v41
    %115 = vmatpush.msra.mxu0 %v40
    %116 = vmatpush.msra.mxu0 %v39
    %117 = vmatpush.msra.mxu0 %v38
    %118 = vmatpush.msra.mxu0 %v37
    %119 = vmatpush.msra.mxu0 %v36
    %120 = vmatpush.msra.mxu0 %v35
    %121 = vmatpush.msra.mxu0 %v34
    %122 = vmatpush.msra.mxu0 %v33
    %123 = vmatpush.msra.mxu0 %v32
    %124 = vmatpush.msra.mxu0 %v31
    %125 = vmatpush.msra.mxu0 %v30
    %126 = vmatpush.msra.mxu0 %v29
    %127 = vmatpush.msra.mxu0 %v28
    %128 = vmatpush.msra.mxu0 %v27
    %129 = vmatmul.f32.gmra.mxu0 %v109
    %v130 = vpop.f32.mrf.mxu0
    %v131 = vadd.f32 0.0, %v130
    %132 = vdwg.mxu0
    %133 = vmatpush.msra.mxu0 %v58
    %134 = vmatpush.msra.mxu0 %v57
    %135 = vmatpush.msra.mxu0 %v56
    %136 = vmatpush.msra.mxu0 %v55
    %137 = vmatpush.msra.mxu0 %v54
    %138 = vmatpush.msra.mxu0 %v53
    %139 = vmatpush.msra.mxu0 %v52
    %140 = vmatpush.msra.mxu0 %v51
    %141 = vmatpush.msra.mxu0 %v50
    %142 = vmatpush.msra.mxu0 %v49
    %143 = vmatpush.msra.mxu0 %v48
    %144 = vmatpush.msra.mxu0 %v47
    %145 = vmatpush.msra.mxu0 %v46
    %146 = vmatpush.msra.mxu0 %v45
    %147 = vmatpush.msra.mxu0 %v44
    %148 = vmatpush.msra.mxu0 %v43
    %149 = vmatmul.f32.gmra.mxu0 %v110
    %v150 = vpop.f32.mrf.mxu0
    %v151 = vadd.f32 %v131, %v150
    %152 = vdwg.mxu0
    %v153 = vld [vmem:[%s0 + $0x8] sm:$0xf]
    %155 = vst [vmem:[#allocation1] ss:$4 sm:$0xff] %v153
    %v156 = vld.sshfl [vmem:[#allocation1] sm:$0xff pattern:$0x73625140]
    %v157 = vld.sshfl [vmem:[#allocation1 + $0x8] sm:$0xff pattern:$0x73625140]
    %160 = vmatpush.msra.mxu0 %v42
    %161 = vmatpush.msra.mxu0 %v41
    %162 = vmatpush.msra.mxu0 %v40
    %163 = vmatpush.msra.mxu0 %v39
    %164 = vmatpush.msra.mxu0 %v38
    %165 = vmatpush.msra.mxu0 %v37
    %166 = vmatpush.msra.mxu0 %v36
    %167 = vmatpush.msra.mxu0 %v35
    %168 = vmatpush.msra.mxu0 %v34
    %169 = vmatpush.msra.mxu0 %v33
    %170 = vmatpush.msra.mxu0 %v32
    %171 = vmatpush.msra.mxu0 %v31
    %172 = vmatpush.msra.mxu0 %v30
    %173 = vmatpush.msra.mxu0 %v29
    %174 = vmatpush.msra.mxu0 %v28
    %175 = vmatpush.msra.mxu0 %v27
    %176 = vmatmul.f32.gmra.mxu0 %v156
    %v177 = vpop.f32.mrf.mxu0
    %v178 = vadd.f32 0.0, %v177
    %179 = vdwg.mxu0
    %180 = vmatpush.msra.mxu0 %v58
    %181 = vmatpush.msra.mxu0 %v57
    %182 = vmatpush.msra.mxu0 %v56
    %183 = vmatpush.msra.mxu0 %v55
    %184 = vmatpush.msra.mxu0 %v54
    %185 = vmatpush.msra.mxu0 %v53
    %186 = vmatpush.msra.mxu0 %v52
    %187 = vmatpush.msra.mxu0 %v51
    %188 = vmatpush.msra.mxu0 %v50
    %189 = vmatpush.msra.mxu0 %v49
    %190 = vmatpush.msra.mxu0 %v48
    %191 = vmatpush.msra.mxu0 %v47
    %192 = vmatpush.msra.mxu0 %v46
    %193 = vmatpush.msra.mxu0 %v45
    %194 = vmatpush.msra.mxu0 %v44
    %195 = vmatpush.msra.mxu0 %v43
    %196 = vmatmul.f32.gmra.mxu0 %v157
    %v197 = vpop.f32.mrf.mxu0
    %v198 = vadd.f32 %v178, %v197
    %199 = vdwg.mxu0
    %v200 = vld [vmem:[%s0 + $0xc] sm:$0xf]
    %202 = vst [vmem:[#allocation1] ss:$4 sm:$0xff] %v200
    %v203 = vld.sshfl [vmem:[#allocation1] sm:$0xff pattern:$0x73625140]
    %v204 = vld.sshfl [vmem:[#allocation1 + $0x8] sm:$0xff pattern:$0x73625140]
    %207 = vmatpush.msra.mxu0 %v42
    %208 = vmatpush.msra.mxu0 %v41
    %209 = vmatpush.msra.mxu0 %v40
    %210 = vmatpush.msra.mxu0 %v39
    %211 = vmatpush.msra.mxu0 %v38
    %212 = vmatpush.msra.mxu0 %v37
    %213 = vmatpush.msra.mxu0 %v36
    %214 = vmatpush.msra.mxu0 %v35
    %215 = vmatpush.msra.mxu0 %v34
    %216 = vmatpush.msra.mxu0 %v33
    %217 = vmatpush.msra.mxu0 %v32
    %218 = vmatpush.msra.mxu0 %v31
    %219 = vmatpush.msra.mxu0 %v30
    %220 = vmatpush.msra.mxu0 %v29
    %221 = vmatpush.msra.mxu0 %v28
    %222 = vmatpush.msra.mxu0 %v27
    %223 = vmatmul.f32.gmra.mxu0 %v203
    %v224 = vpop.f32.mrf.mxu0
    %v225 = vadd.f32 0.0, %v224
    %226 = vdwg.mxu0
    %227 = vmatpush.msra.mxu0 %v58
    %228 = vmatpush.msra.mxu0 %v57
    %229 = vmatpush.msra.mxu0 %v56
    %230 = vmatpush.msra.mxu0 %v55
    %231 = vmatpush.msra.mxu0 %v54
    %232 = vmatpush.msra.mxu0 %v53
    %233 = vmatpush.msra.mxu0 %v52
    %234 = vmatpush.msra.mxu0 %v51
    %235 = vmatpush.msra.mxu0 %v50
    %236 = vmatpush.msra.mxu0 %v49
    %237 = vmatpush.msra.mxu0 %v48
    %238 = vmatpush.msra.mxu0 %v47
    %239 = vmatpush.msra.mxu0 %v46
    %240 = vmatpush.msra.mxu0 %v45
    %241 = vmatpush.msra.mxu0 %v44
    %242 = vmatpush.msra.mxu0 %v43
    %243 = vmatmul.f32.gmra.mxu0 %v204
    %v244 = vpop.f32.mrf.mxu0
    %v245 = vadd.f32 %v225, %v244
    %246 = vdwg.mxu0
    %248 = vrot.lane.b32.xlu0 %v151, 32
    %v249 = vpop.permute.xlu0 %248
    %252 = vrot.lane.b32.xlu0 %v198, 64
    %v253 = vpop.permute.xlu0 %252
    %256 = vrot.lane.b32.xlu0 %v245, 96
    %v257 = vpop.permute.xlu0 %256
    %vm259 = vcmask 261120
    %v260 = vsel %vm259, %v104, %v249
    %vm261 = vcmask 523264
    %v262 = vsel %vm261, %v260, %v253
    %vm263 = vcmask 785408
    %v264 = vsel %vm263, %v262, %v257
    %v265 = vld [vmem:[%s6] sm:$0x1]
    %v266 = vperm.slane %v265, 0
    %v267 = vadd.f32 %v264, %v266
    %v268 = vld [vmem:[%s6 + $0x1] sm:$0x1]
    %v269 = vperm.slane %v268, 0
    %v270 = vmul.f32 %v267, %v269
    %v271 = vld [vmem:[%s6 + $0x2] sm:$0x1]
    %v272 = vperm.slane %v271, 0
    %v273 = vadd.f32 %v270, %v272
    %v274 = vld [vmem:[%s2] sm:$0xff]
    %v275 = vld [vmem:[%s2 + $0x8] sm:$0xff]
    %v276 = vld [vmem:[%s2 + $0x10] sm:$0xff]
    %v277 = vld [vmem:[%s2 + $0x18] sm:$0xff]
    %v278 = vld [vmem:[%s2 + $0x20] sm:$0xff]
    %v279 = vld [vmem:[%s2 + $0x28] sm:$0xff]
    %v280 = vld [vmem:[%s2 + $0x30] sm:$0xff]
    %v281 = vld [vmem:[%s2 + $0x38] sm:$0xff]
    %v282 = vld [vmem:[%s2 + $0x40] sm:$0xff]
    %v283 = vld [vmem:[%s2 + $0x48] sm:$0xff]
    %v284 = vld [vmem:[%s2 + $0x50] sm:$0xff]
    %v285 = vld [vmem:[%s2 + $0x58] sm:$0xff]
    %v286 = vld [vmem:[%s2 + $0x60] sm:$0xff]
    %v287 = vld [vmem:[%s2 + $0x68] sm:$0xff]
    %v288 = vld [vmem:[%s2 + $0x70] sm:$0xff]
    %v289 = vld [vmem:[%s2 + $0x78] sm:$0xff]
    %v290 = vld [vmem:[%s6 + $0x3] sm:$0x1]
    %v291 = vperm.slane %v290, 0
    %292 = vmatpush.msra.mxu0 %v289
    %293 = vmatpush.msra.mxu0 %v288
    %294 = vmatpush.msra.mxu0 %v287
    %295 = vmatpush.msra.mxu0 %v286
    %296 = vmatpush.msra.mxu0 %v285
    %297 = vmatpush.msra.mxu0 %v284
    %298 = vmatpush.msra.mxu0 %v283
    %299 = vmatpush.msra.mxu0 %v282
    %300 = vmatpush.msra.mxu0 %v281
    %301 = vmatpush.msra.mxu0 %v280
    %302 = vmatpush.msra.mxu0 %v279
    %303 = vmatpush.msra.mxu0 %v278
    %304 = vmatpush.msra.mxu0 %v277
    %305 = vmatpush.msra.mxu0 %v276
    %306 = vmatpush.msra.mxu0 %v275
    %307 = vmatpush.msra.mxu0 %v274
    %308 = vmatmul.f32.gmra.mxu0 %v273
    %v309 = vpop.f32.mrf.mxu0
    %v310 = vadd.f32 %v291, %v309
    %311 = vdwg.mxu0
    %v312 = vmax.f32 %v310, 0.0
    %v313 = vld [vmem:[%s3] sm:$0xff]
    %v314 = vld [vmem:[%s3 + $0x8] sm:$0xff]
    %v315 = vld [vmem:[%s3 + $0x10] sm:$0xff]
    %v316 = vld [vmem:[%s3 + $0x18] sm:$0xff]
    %v317 = vld [vmem:[%s6 + $0x4] sm:$0x1]
    %v318 = vperm.slane %v317, 0
    %v320 = vsel %vm259, %v312, 0
    %322 = vmatpush.msra.mxu0 0.0
    %323 = vmatpush.msra.mxu0 0.0
    %324 = vmatpush.msra.mxu0 0.0
    %325 = vmatpush.msra.mxu0 0.0
    %326 = vmatpush.msra.mxu0 0.0
    %327 = vmatpush.msra.mxu0 0.0
    %328 = vmatpush.msra.mxu0 0.0
    %329 = vmatpush.msra.mxu0 0.0
    %330 = vmatpush.msra.mxu0 0.0
    %331 = vmatpush.msra.mxu0 0.0
    %332 = vmatpush.msra.mxu0 0.0
    %333 = vmatpush.msra.mxu0 0.0
    %334 = vmatpush.msra.mxu0 %v316
    %335 = vmatpush.msra.mxu0 %v315
    %336 = vmatpush.msra.mxu0 %v314
    %337 = vmatpush.msra.mxu0 %v313
    %338 = vmatmul.f32.gmra.mxu0 %v320
    %v339 = vpop.f32.mrf.mxu0
    %v340 = vadd.f32 %v318, %v339
    %341 = vdwg.mxu0
    %v342 = vmax.f32 %v340, 0.0
    %v343 = vld [vmem:[%s4] sm:$0xff]
    %v344 = vld [vmem:[%s4 + $0x8] sm:$0xff]
    %v345 = vld [vmem:[%s4 + $0x10] sm:$0xff]
    %v346 = vld [vmem:[%s4 + $0x18] sm:$0xff]
    %v347 = vld [vmem:[%s6 + $0x5] sm:$0x1]
    %v348 = vperm.slane %v347, 0
    %v350 = vsel %vm259, %v342, 0
    %352 = vmatpush.msra.mxu0 0.0
    %353 = vmatpush.msra.mxu0 0.0
    %354 = vmatpush.msra.mxu0 0.0
    %355 = vmatpush.msra.mxu0 0.0
    %356 = vmatpush.msra.mxu0 0.0
    %357 = vmatpush.msra.mxu0 0.0
    %358 = vmatpush.msra.mxu0 0.0
    %359 = vmatpush.msra.mxu0 0.0
    %360 = vmatpush.msra.mxu0 0.0
    %361 = vmatpush.msra.mxu0 0.0
    %362 = vmatpush.msra.mxu0 0.0
    %363 = vmatpush.msra.mxu0 0.0
    %364 = vmatpush.msra.mxu0 %v346
    %365 = vmatpush.msra.mxu0 %v345
    %366 = vmatpush.msra.mxu0 %v344
    %367 = vmatpush.msra.mxu0 %v343
    %368 = vmatmul.f32.gmra.mxu0 %v350
    %v369 = vpop.f32.mrf.mxu0
    %v370 = vadd.f32 %v348, %v369
    %371 = vdwg.mxu0
    %v372 = vmax.f32 %v370, 0.0
    %v373 = vmul.f32 %v372, 0.6
    %v374 = vmul.f32 %v267, 0.4
    %v375 = vadd.f32 %v373, %v374
    %v376 = vmul.f32 %v375, %v375
    %vm377 = vcmask 1041408
    %v378 = vsel %vm377, %v376, 0.0
    %379 = vadd.xlane.f32.xlu0 %v378
    %v380 = vpop.xlane.xlu0 %379
    %v381 = vmax.f32 %v380, 1e-12
    %v382 = vrsqrt.pop %v381
    %v383 = vmul.f32 %v382, %v381
    %v384 = vmul.f32 %v383, %v382
    %v385 = vmul.f32 0.5, %v384
    %v386 = vsub.f32 1.5, %v385
    %v387 = vmul.f32 %v382, %v386
    %vm388 = vweird.f32 %v381
    %vm389 = vweird.f32 %v382
    %vm390 = vmor %vm388, %vm389
    %v391 = vsel %vm390, %v382, %v387
    %v392 = vmul.f32 %v375, %v391
    %v393 = vld [vmem:[%s5] sm:$0xff]
    %v394 = vld [vmem:[%s5 + $0x8] sm:$0xff]
    %v395 = vld [vmem:[%s5 + $0x10] sm:$0xff]
    %v396 = vld [vmem:[%s5 + $0x18] sm:$0xff]
    %v397 = vld [vmem:[%s5 + $0x20] sm:$0xff]
    %v398 = vld [vmem:[%s5 + $0x28] sm:$0xff]
    %v399 = vld [vmem:[%s5 + $0x30] sm:$0xff]
    %v400 = vld [vmem:[%s5 + $0x38] sm:$0xff]
    %v401 = vld [vmem:[%s5 + $0x40] sm:$0xff]
    %v402 = vld [vmem:[%s5 + $0x48] sm:$0xff]
    %v403 = vld [vmem:[%s5 + $0x50] sm:$0xff]
    %v404 = vld [vmem:[%s5 + $0x58] sm:$0xff]
    %v405 = vld [vmem:[%s5 + $0x60] sm:$0xff]
    %v406 = vld [vmem:[%s5 + $0x68] sm:$0xff]
    %v407 = vld [vmem:[%s5 + $0x70] sm:$0xff]
    %v408 = vld [vmem:[%s5 + $0x78] sm:$0xff]
    %409 = vmatpush.msra.mxu0 %v408
    %410 = vmatpush.msra.mxu0 %v407
    %411 = vmatpush.msra.mxu0 %v406
    %412 = vmatpush.msra.mxu0 %v405
    %413 = vmatpush.msra.mxu0 %v404
    %414 = vmatpush.msra.mxu0 %v403
    %415 = vmatpush.msra.mxu0 %v402
    %416 = vmatpush.msra.mxu0 %v401
    %417 = vmatpush.msra.mxu0 %v400
    %418 = vmatpush.msra.mxu0 %v399
    %419 = vmatpush.msra.mxu0 %v398
    %420 = vmatpush.msra.mxu0 %v397
    %421 = vmatpush.msra.mxu0 %v396
    %422 = vmatpush.msra.mxu0 %v395
    %423 = vmatpush.msra.mxu0 %v394
    %424 = vmatpush.msra.mxu0 %v393
    %425 = vmatmul.f32.gmra.mxu0 %v392
    %v426 = vpop.f32.mrf.mxu0
    %v427 = vadd.f32 0.0, %v426
    %428 = vdwg.mxu0
    %429 = vst [vmem:[#allocation2] sm:$0x3] %v427
    // Predicated region
    $region30: #{pointclip_forward.1} parent=1 // pred_check
      _
    $region31: #{pointclip_forward.1} parent=1 // pred_check_branch
      %431 = sbr.rel (0) target = $region33
    $region32: #{pointclip_forward.1} parent=1 // pred_region
      %433 = vsyncadd [#allocation3], 0
      %s435 = sshll.u32 [#allocation2], 4
      %s436 = int_to_ptr.vmem [resolvable:$true] %s435
      %s437 = sshll.u32 %s7, 4
      %s438 = int_to_ptr.hbm [resolvable:$true] %s437
      %440 = dma.vmem_to_hbm [thread:$0]  %s436, 32, %s438, [#allocation3]
    $region33: #{pointclip_forward.1} parent=1 // pred_fallthru
      _
    // Predicated region
    $region34: #{pointclip_forward.1} parent=1 // pred_check
      _
    $region35: #{pointclip_forward.1} parent=1 // pred_check_branch
      %442 = sbr.rel (0) target = $region37
    $region36: #{pointclip_forward.1} parent=1 // pred_region
      %444 = dma.done [#allocation3], 32
    $region37: #{pointclip_forward.1} parent=1 // pred_fallthru
      _
    %445 = vsyncpa [#allocation3], 1

</llo_original>
